<compile_context>
chip_gen: v7x
topology: tpu7x:2x2x1
jax: 0.10.0
libtpu: 0.0.40
codegen_flags: <defaults>
</compile_context>

<pallas_src>
import functools

import jax
import jax.numpy as jnp
from jax import lax
from jax.experimental import pallas as pl
from jax.experimental.pallas import tpu as pltpu

_LANE = 128
_SUBLANE = 8


@functools.lru_cache(maxsize=None)
def _vmem_budget():
    """Returns (tile_bytes, vmem_limit_bytes) sized for the local TPU generation."""
    try:
        cap = int(pltpu.get_tpu_info().vmem_capacity_bytes)
    except Exception:
        cap = 64 * 1024 * 1024  # conservative: assume v7x-sized (64 MiB / TC) VMEM
    if cap >= 100 * 1024 * 1024:
        # v5e / v6e: 128 MiB physical VMEM -> big tiles, generous scoped limit.
        return 8 * 1024 * 1024, 64 * 1024 * 1024
    # v7x (64 MiB per TensorCore) or unknown: keep 2x tile + scratch well under cap.
    return 4 * 1024 * 1024, 48 * 1024 * 1024


def _largest_divisor_at_most(n, cap):
    cap = int(max(1, min(n, cap)))
    for d in range(cap, 0, -1):
        if n % d == 0:
            return d
    return 1


def _choose_tiles(C, H, W, itemsize, target_bytes):
    """Pick (TC, TH) dividing (C, H) so a (TC, TH, W) tile is ~target_bytes.

    Prefers TH that is a multiple of 8 (even if it undershoots the byte budget)
    so the channel fold is layout-preserving and the roll fast path stays on.
    """
    row_bytes = max(1, W * itemsize)
    max_rows = max(1, target_bytes // row_bytes)  # budget for TC * TH rows
    cap = int(min(H, max_rows))

    th_aligned = 0
    for d in range(cap, 0, -1):
        if H % d == 0 and d % _SUBLANE == 0:
            th_aligned = d
            break

    if th_aligned:
        th = th_aligned
        tc = _largest_divisor_at_most(C, max(1, max_rows // th))
    else:
        th = _largest_divisor_at_most(H, cap)
        tc = 1
    return tc, th


def _tv_kernel(x_ref, h_out_ref, w_out_ref,
               prev_rows_ref, h_acc_ref, w_acc_ref,
               *, n_h_tiles, use_roll):
    h_idx = pl.program_id(2)
    n_h = pl.num_programs(2)

    tc, th, w = x_ref.shape
    n_rows = tc * th

    # Zero the per-(batch, channel-tile) lane-wise accumulators at H step 0.
    @pl.when(h_idx == 0)
    def _():
        h_acc_ref[...] = jnp.zeros_like(h_acc_ref)
        w_acc_ref[...] = jnp.zeros_like(w_acc_ref)

    x3 = x_ref[...]                      # (TC, TH, W), native dtype
    x2 = x3.reshape(n_rows, w)           # fold (channel, row) -> sublane axis

    # ---- horizontal (W) squared differences ------------------------------
    if w > 1:
        if use_roll:
            # Accumulate every lane; the wrap term (x[:,0]-x[:,w-1]) only ever
            # lands in lane 0 of w_acc, which is excluded once at finalize.
            # No per-step full-tile mask.
            prev = pltpu.roll(x2, shift=1, axis=1)      # prev[:, j] = x2[:, j-1]
            dw = (x2 - prev).astype(jnp.float32)
            w_acc_ref[...] += jnp.sum(dw * dw, axis=0, keepdims=True)
        else:
            dw = (x2[:, 1:] - x2[:, :-1]).astype(jnp.float32)   # (n_rows, w-1)
            w_acc_ref[:, : w - 1] += jnp.sum(dw * dw, axis=0, keepdims=True)

    # ---- vertical (H) squared differences, rows inside this tile ---------
    if th > 1:
        if use_roll:
            # Accumulate every rolled row, then subtract the tc invalid
            # wrap/channel-boundary rows with a tiny (tc, W) correction
            # instead of a full-tile iota mask.
            prev = pltpu.roll(x2, shift=1, axis=0)      # prev[r] = x2[r-1]
            dh = (x2 - prev).astype(jnp.float32)
            h_acc_ref[...] += jnp.sum(dh * dh, axis=0, keepdims=True)

            first_rows = x3[:, 0, :]                    # (TC, W) native dtype
            last_rows = x3[:, th - 1, :]                # (TC, W) native dtype
            # wrap row (tile row 0): x3[0,0,:] - x3[tc-1,th-1,:]
            d0 = (first_rows[0:1] - last_rows[tc - 1:tc]).astype(jnp.float32)
            corr = d0 * d0
            if tc > 1:
                # channel-boundary rows: x3[c,0,:] - x3[c-1,th-1,:], c=1..tc-1
                dc = (first_rows[1:] - last_rows[: tc - 1]).astype(jnp.float32)
                corr = corr + jnp.sum(dc * dc, axis=0, keepdims=True)
            h_acc_ref[...] -= corr
        else:
            dh = (x2[1:, :] - x2[:-1, :]).astype(jnp.float32)   # (n_rows-1, w)
            if tc > 1:
                row = lax.broadcasted_iota(jnp.int32, (n_rows - 1, w), 0)
                dh = jnp.where(row % th != th - 1, dh, 0.0)
            h_acc_ref[...] += jnp.sum(dh * dh, axis=0, keepdims=True)

    # ---- vertical boundary between consecutive H tiles (carried rows) ----
    if n_h_tiles > 1:
        @pl.when(h_idx > 0)
        def _():
            first_rows = x3[:, 0, :]                    # (TC, W) native dtype
            db = (first_rows - prev_rows_ref[...]).astype(jnp.float32)
            h_acc_ref[...] += jnp.sum(db * db, axis=0, keepdims=True)

        # Carry the last row of each channel for the next H tile.
        prev_rows_ref[...] = x3[:, th - 1, :]

    # ---- finalize this (batch, channel-tile): cross-lane reduce + store --
    @pl.when(h_idx == n_h - 1)
    def _():
        h_out_ref[...] = jnp.sum(h_acc_ref[...]).reshape(1, 1)
        w_all = w_acc_ref[...]
        if use_roll and w > 1:
            # Drop the wrap lane once per (b, c) instead of masking every step.
            lane = lax.broadcasted_iota(jnp.int32, w_all.shape, 1)
            w_all = jnp.where(lane > 0, w_all, 0.0)
        w_out_ref[...] = jnp.sum(w_all).reshape(1, 1)


@functools.partial(
    jax.jit, static_argnames=("tv_loss_weight", "tile_bytes", "vmem_limit_bytes"))
def _tv_loss_impl(x, tv_loss_weight, tile_bytes, vmem_limit_bytes):
    B, C, H, W = x.shape
    itemsize = x.dtype.itemsize
    tc, th = _choose_tiles(C, H, W, itemsize, tile_bytes)
    n_c = C // tc
    n_h = H // th
    n_rows = tc * th
    # Roll fast path only on vreg-aligned tiles; slices otherwise (always lowers).
    # TODO(synk): could relax the W % 128 gate (roll on e.g. W=224) after
    # verifying lowering with pl.lower_as_mlir; kept conservative here.
    use_roll = (W % _LANE == 0) and (n_rows % _SUBLANE == 0)

    kernel = functools.partial(_tv_kernel, n_h_tiles=n_h, use_roll=use_roll)

    h_part, w_part = pl.pallas_call(
        kernel,
        out_shape=(
            jax.ShapeDtypeStruct((B, n_c, 1, 1), jnp.float32),
            jax.ShapeDtypeStruct((B, n_c, 1, 1), jnp.float32),
        ),
        grid_spec=pltpu.PrefetchScalarGridSpec(
            num_scalar_prefetch=0,
            grid=(B, n_c, n_h),
            in_specs=[
                # Batch dim squeezed out of the kernel view; native dtype block.
                pl.BlockSpec((None, tc, th, W), lambda b, c, h: (b, c, h, 0)),
            ],
            out_specs=[
                pl.BlockSpec((None, None, 1, 1), lambda b, c, h: (b, c, 0, 0)),
                pl.BlockSpec((None, None, 1, 1), lambda b, c, h: (b, c, 0, 0)),
            ],
            scratch_shapes=[
                pltpu.VMEM((tc, W), x.dtype),      # carried last rows (H halo)
                pltpu.VMEM((1, W), jnp.float32),   # lane-wise h_tv accumulator
                pltpu.VMEM((1, W), jnp.float32),   # lane-wise w_tv accumulator
            ],
        ),
        compiler_params=pltpu.CompilerParams(
            # Batch AND channel axes parallel: per-(b,c) partials let v7x's two
            # TensorCores split work even at B == 1.  Reduction (H) axis is
            # sequential, so the halo carry stays on one core per (b, c).
            dimension_semantics=("parallel", "parallel", "arbitrary"),
            vmem_limit_bytes=int(vmem_limit_bytes),
        ),
    )(x)

    h_tv = jnp.sum(h_part)
    w_tv = jnp.sum(w_part)

    count_h = C * (H - 1) * W
    count_w = C * H * (W - 1)
    # TODO(synk): count_h/count_w are 0 when H==1 or W==1; the PyTorch reference
    # divides by zero there too, so that behavior is intentionally mirrored.
    return tv_loss_weight * 2.0 * (h_tv / count_h + w_tv / count_w) / B


def tv_loss(x, tv_loss_weight=1.0, tile_bytes=None, vmem_limit_bytes=None):
    """Port of TVLoss.forward for NCHW input x (native-dtype diffs, f32 accumulation)."""
    default_tile, default_limit = _vmem_budget()
    if tile_bytes is None:
        tile_bytes = default_tile
    if vmem_limit_bytes is None:
        vmem_limit_bytes = default_limit
    return _tv_loss_impl(x, float(tv_loss_weight), int(tile_bytes), int(vmem_limit_bytes))


def tv_loss_ref(x, tv_loss_weight=1.0):
    """Pure-JAX reference mirroring TVLoss.forward (f32 accumulation)."""
    B, C, H, W = x.shape
    count_h = C * (H - 1) * W
    count_w = C * H * (W - 1)
    dh = (x[:, :, 1:, :] - x[:, :, : H - 1, :]).astype(jnp.float32)
    dw = (x[:, :, :, 1:] - x[:, :, :, : W - 1]).astype(jnp.float32)
    h_tv = jnp.sum(dh * dh)
    w_tv = jnp.sum(dw * dw)
    return tv_loss_weight * 2.0 * (h_tv / count_h + w_tv / count_w) / B


if __name__ == "__main__":
    key = jax.random.PRNGKey(0)
    k1, k2, k3, k4 = jax.random.split(key, 4)

    # 1) Required small NCHW case (W < 128 -> slice path, whole sample per tile).
    x1 = jax.random.normal(k1, (2, 4, 16, 16), dtype=jnp.float32)
    out1 = jax.block_until_ready(tv_loss(x1, tv_loss_weight=1.0))
    ref1 = tv_loss_ref(x1, tv_loss_weight=1.0)
    assert jnp.allclose(out1, ref1, rtol=1e-4, atol=1e-5), (out1, ref1)

    # 2) Lane-aligned image: exercises the mask-free pltpu.roll fast path.
    x2 = jax.random.normal(k2, (2, 3, 256, 256), dtype=jnp.float32)
    out2 = jax.block_until_ready(tv_loss(x2, tv_loss_weight=0.5))
    ref2 = tv_loss_ref(x2, tv_loss_weight=0.5)
    assert jnp.allclose(out2, ref2, rtol=1e-4, atol=1e-5), (out2, ref2)

    # 3) Forced small tiles: exercises C/H tiling, per-(b,c) partials, and the
    #    carried-row H halo.
    x3 = jax.random.normal(k3, (1, 3, 64, 128), dtype=jnp.float32)
    out3 = jax.block_until_ready(tv_loss(x3, tv_loss_weight=1.0, tile_bytes=16 * 1024))
    ref3 = tv_loss_ref(x3, tv_loss_weight=1.0)
    assert jnp.allclose(out3, ref3, rtol=1e-4, atol=1e-5), (out3, ref3)

    # 4) bf16 input stays bf16 in VMEM; only diffs are upcast to f32.
    x4 = jax.random.normal(k4, (2, 3, 32, 128), dtype=jnp.bfloat16)
    out4 = jax.block_until_ready(tv_loss(x4, tv_loss_weight=1.0))
    ref4 = tv_loss_ref(x4, tv_loss_weight=1.0)
    assert jnp.allclose(out4, ref4, rtol=2e-2, atol=2e-2), (out4, ref4)

    print("KERNEL_OK")
</pallas_src>

<mosaic_0001>
module attributes {stable_mosaic.version = 11 : i64} {
  func.func @_tv_kernel(%arg0: i32, %arg1: i32, %arg2: i32, %arg3: memref<1x4x16x16xf32, #tpu.memory_space<vmem>>, %arg4: memref<1x1x1x1xf32, #tpu.memory_space<vmem>>, %arg5: memref<1x1x1x1xf32, #tpu.memory_space<vmem>>, %arg6: memref<4x16xf32, #tpu.memory_space<vmem>>, %arg7: memref<1x16xf32, #tpu.memory_space<vmem>>, %arg8: memref<1x16xf32, #tpu.memory_space<vmem>>) attributes {dimension_semantics = [#tpu.dimension_semantics<parallel>, #tpu.dimension_semantics<parallel>, #tpu.dimension_semantics<arbitrary>], iteration_bounds = array<i64: 2, 1, 1>, scalar_prefetch = 0 : i64, scratch_operands = 3 : i64, tpu.core_type = #tpu.core_type<tc>, window_params = [{transform_indices = @transform_0, window_bounds = array<i64: 1, 4, 16, 16>}, {transform_indices = @transform_1, window_bounds = array<i64: 1, 1, 1, 1>}, {transform_indices = @transform_2, window_bounds = array<i64: 1, 1, 1, 1>}]} {
    %c0_i32 = arith.constant 0 : i32
    %0 = arith.cmpi eq, %arg2, %c0_i32 : i32
    %1 = arith.extui %0 : i1 to i32
    %c0_i32_0 = arith.constant 0 : i32
    %2 = arith.cmpi ne, %1, %c0_i32_0 : i32
    scf.if %2 {
      %cst_20 = arith.constant 0.000000e+00 : f32
      %48 = vector.broadcast %cst_20 : f32 to vector<1x16xf32>
      %c0_21 = arith.constant 0 : index
      %c0_22 = arith.constant 0 : index
      %49 = vector.load %arg7[%c0_21, %c0_22] : memref<1x16xf32, #tpu.memory_space<vmem>>, vector<1x16xf32>
      tpu.vector_store %arg7[%c0_21, %c0_22], %48 {strides = array<i32>} : memref<1x16xf32, #tpu.memory_space<vmem>>, vector<1x16xf32>,
      %cst_23 = arith.constant 0.000000e+00 : f32
      %50 = vector.broadcast %cst_23 : f32 to vector<1x16xf32>
      %c0_24 = arith.constant 0 : index
      %c0_25 = arith.constant 0 : index
      %51 = vector.load %arg8[%c0_24, %c0_25] : memref<1x16xf32, #tpu.memory_space<vmem>>, vector<1x16xf32>
      tpu.vector_store %arg8[%c0_24, %c0_25], %50 {strides = array<i32>} : memref<1x16xf32, #tpu.memory_space<vmem>>, vector<1x16xf32>,
    } else {
    }
    %c0 = arith.constant 0 : index
    %c0_1 = arith.constant 0 : index
    %c0_2 = arith.constant 0 : index
    %c0_3 = arith.constant 0 : index
    %3 = vector.load %arg3[%c0, %c0_1, %c0_2, %c0_3] : memref<1x4x16x16xf32, #tpu.memory_space<vmem>>, vector<1x4x16x16xf32>
    %4 = vector.shape_cast %3 : vector<1x4x16x16xf32> to vector<4x16x16xf32>
    %5 = vector.shape_cast %4 : vector<4x16x16xf32> to vector<64x16xf32>
    %6 = vector.extract_strided_slice %5 {offsets = [0, 1], sizes = [64, 15], strides = [1, 1]} : vector<64x16xf32> to vector<64x15xf32>
    %7 = vector.extract_strided_slice %5 {offsets = [0, 0], sizes = [64, 15], strides = [1, 1]} : vector<64x16xf32> to vector<64x15xf32>
    %8 = arith.subf %6, %7 : vector<64x15xf32>
    %c0_4 = arith.constant 0 : index
    %c0_5 = arith.constant 0 : index
    %9 = vector.load %arg8[%c0_4, %c0_5] : memref<1x16xf32, #tpu.memory_space<vmem>>, vector<1x15xf32>
    %10 = arith.mulf %8, %8 : vector<64x15xf32>
    %cst = arith.constant dense<0.000000e+00> : vector<15xf32>
    %11 = vector.multi_reduction <add>, %10, %cst [0] : vector<64x15xf32> to vector<15xf32>
    %12 = vector.shape_cast %11 : vector<15xf32> to vector<1x15xf32>
    %13 = arith.addf %9, %12 : vector<1x15xf32>
    %c0_6 = arith.constant 0 : index
    %c0_7 = arith.constant 0 : index
    %14 = vector.load %arg8[%c0_6, %c0_7] : memref<1x16xf32, #tpu.memory_space<vmem>>, vector<1x15xf32>
    tpu.vector_store %arg8[%c0_6, %c0_7], %13 {strides = array<i32>} : memref<1x16xf32, #tpu.memory_space<vmem>>, vector<1x15xf32>,
    %15 = vector.extract_strided_slice %5 {offsets = [1, 0], sizes = [63, 16], strides = [1, 1]} : vector<64x16xf32> to vector<63x16xf32>
    %16 = vector.extract_strided_slice %5 {offsets = [0, 0], sizes = [63, 16], strides = [1, 1]} : vector<64x16xf32> to vector<63x16xf32>
    %17 = arith.subf %15, %16 : vector<63x16xf32>
    %18 = tpu.iota {dimensions = array<i32: 0>} : vector<63x16xi32>
    %c16_i32 = arith.constant 16 : i32
    %c0_i32_8 = arith.constant 0 : i32
    %19 = arith.cmpi eq, %c16_i32, %c0_i32_8 : i32
    %c1_i32 = arith.constant 1 : i32
    %20 = arith.select %19, %c1_i32, %c16_i32 : i32
    %21 = vector.broadcast %20 : i32 to vector<63x16xi32>
    %22 = arith.remsi %18, %21 : vector<63x16xi32>
    %c0_i32_9 = arith.constant 0 : i32
    %23 = vector.broadcast %c0_i32_9 : i32 to vector<63x16xi32>
    %24 = arith.cmpi ne, %22, %23 : vector<63x16xi32>
    %c0_i32_10 = arith.constant 0 : i32
    %25 = vector.broadcast %c0_i32_10 : i32 to vector<63x16xi32>
    %26 = arith.cmpi slt, %22, %25 : vector<63x16xi32>
    %c0_i32_11 = arith.constant 0 : i32
    %27 = arith.cmpi slt, %20, %c0_i32_11 : i32
    %28 = vector.broadcast %27 : i1 to vector<63x16xi1>
    %29 = vector.broadcast %28 : vector<63x16xi1> to vector<63x16xi1>
    %30 = arith.xori %26, %29 : vector<63x16xi1>
    %31 = arith.andi %30, %24 : vector<63x16xi1>
    %32 = vector.broadcast %20 : i32 to vector<63x16xi32>
    %33 = arith.addi %22, %32 : vector<63x16xi32>
    %34 = arith.select %31, %33, %22 : vector<63x16xi1>, vector<63x16xi32>
    %c15_i32 = arith.constant 15 : i32
    %35 = vector.broadcast %c15_i32 : i32 to vector<63x16xi32>
    %36 = arith.cmpi ne, %34, %35 : vector<63x16xi32>
    %cst_12 = arith.constant 0.000000e+00 : f32
    %37 = vector.broadcast %cst_12 : f32 to vector<63x16xf32>
    %38 = arith.select %36, %17, %37 : vector<63x16xi1>, vector<63x16xf32>
    %c0_13 = arith.constant 0 : index
    %c0_14 = arith.constant 0 : index
    %39 = vector.load %arg7[%c0_13, %c0_14] : memref<1x16xf32, #tpu.memory_space<vmem>>, vector<1x16xf32>
    %40 = arith.mulf %38, %38 : vector<63x16xf32>
    %cst_15 = arith.constant dense<0.000000e+00> : vector<16xf32>
    %41 = vector.multi_reduction <add>, %40, %cst_15 [0] : vector<63x16xf32> to vector<16xf32>
    %42 = vector.shape_cast %41 : vector<16xf32> to vector<1x16xf32>
    %43 = arith.addf %39, %42 : vector<1x16xf32>
    %c0_16 = arith.constant 0 : index
    %c0_17 = arith.constant 0 : index
    %44 = vector.load %arg7[%c0_16, %c0_17] : memref<1x16xf32, #tpu.memory_space<vmem>>, vector<1x16xf32>
    tpu.vector_store %arg7[%c0_16, %c0_17], %43 {strides = array<i32>} : memref<1x16xf32, #tpu.memory_space<vmem>>, vector<1x16xf32>,
    %c0_i32_18 = arith.constant 0 : i32
    %45 = arith.cmpi eq, %arg2, %c0_i32_18 : i32
    %46 = arith.extui %45 : i1 to i32
    %c0_i32_19 = arith.constant 0 : i32
    %47 = arith.cmpi ne, %46, %c0_i32_19 : i32
    scf.if %47 {
      %c0_20 = arith.constant 0 : index
      %c0_21 = arith.constant 0 : index
      %48 = vector.load %arg7[%c0_20, %c0_21] : memref<1x16xf32, #tpu.memory_space<vmem>>, vector<1x16xf32>
      %49 = vector.shape_cast %48 : vector<1x16xf32> to vector<1x1x16xf32>
      %cst_22 = arith.constant dense<0.000000e+00> : vector<1xf32>
      %50 = vector.multi_reduction <add>, %49, %cst_22 [1, 2] : vector<1x1x16xf32> to vector<1xf32>
      %51 = vector.shape_cast %50 : vector<1xf32> to vector<1x1x1xf32>
      %52 = vector.extract %51[0, 0, 0] : f32 from vector<1x1x1xf32>
      %53 = vector.broadcast %52 : f32 to vector<1x1xf32>
      %c0_23 = arith.constant 0 : index
      %c0_24 = arith.constant 0 : index
      %c0_25 = arith.constant 0 : index
      %c0_26 = arith.constant 0 : index
      %54 = vector.load %arg4[%c0_23, %c0_24, %c0_25, %c0_26] : memref<1x1x1x1xf32, #tpu.memory_space<vmem>>, vector<1x1x1x1xf32>
      %55 = vector.shape_cast %54 : vector<1x1x1x1xf32> to vector<1x1xf32>
      %56 = vector.shape_cast %53 : vector<1x1xf32> to vector<1x1x1x1xf32>
      tpu.vector_store %arg4[%c0_23, %c0_24, %c0_25, %c0_26], %56 {strides = array<i32>} : memref<1x1x1x1xf32, #tpu.memory_space<vmem>>, vector<1x1x1x1xf32>,
      %c0_27 = arith.constant 0 : index
      %c0_28 = arith.constant 0 : index
      %57 = vector.load %arg8[%c0_27, %c0_28] : memref<1x16xf32, #tpu.memory_space<vmem>>, vector<1x16xf32>
      %58 = vector.shape_cast %57 : vector<1x16xf32> to vector<1x1x16xf32>
      %cst_29 = arith.constant dense<0.000000e+00> : vector<1xf32>
      %59 = vector.multi_reduction <add>, %58, %cst_29 [1, 2] : vector<1x1x16xf32> to vector<1xf32>
      %60 = vector.shape_cast %59 : vector<1xf32> to vector<1x1x1xf32>
      %61 = vector.extract %60[0, 0, 0] : f32 from vector<1x1x1xf32>
      %62 = vector.broadcast %61 : f32 to vector<1x1xf32>
      %c0_30 = arith.constant 0 : index
      %c0_31 = arith.constant 0 : index
      %c0_32 = arith.constant 0 : index
      %c0_33 = arith.constant 0 : index
      %63 = vector.load %arg5[%c0_30, %c0_31, %c0_32, %c0_33] : memref<1x1x1x1xf32, #tpu.memory_space<vmem>>, vector<1x1x1x1xf32>
      %64 = vector.shape_cast %63 : vector<1x1x1x1xf32> to vector<1x1xf32>
      %65 = vector.shape_cast %62 : vector<1x1xf32> to vector<1x1x1x1xf32>
      tpu.vector_store %arg5[%c0_30, %c0_31, %c0_32, %c0_33], %65 {strides = array<i32>} : memref<1x1x1x1xf32, #tpu.memory_space<vmem>>, vector<1x1x1x1xf32>,
    } else {
    }
    return
  }
  func.func @transform_0(%arg0: i32, %arg1: i32, %arg2: i32) -> (i32, i32, i32, i32) {
    %c0_i32 = arith.constant 0 : i32
    %c0_i32_0 = arith.constant 0 : i32
    return %arg0, %arg1, %arg2, %c0_i32 : i32, i32, i32, i32
  }
  func.func @transform_1(%arg0: i32, %arg1: i32, %arg2: i32) -> (i32, i32, i32, i32) {
    %c0_i32 = arith.constant 0 : i32
    %c0_i32_0 = arith.constant 0 : i32
    %c0_i32_1 = arith.constant 0 : i32
    return %arg0, %arg1, %c0_i32, %c0_i32_0 : i32, i32, i32, i32
  }
  func.func @transform_2(%arg0: i32, %arg1: i32, %arg2: i32) -> (i32, i32, i32, i32) {
    %c0_i32 = arith.constant 0 : i32
    %c0_i32_0 = arith.constant 0 : i32
    %c0_i32_1 = arith.constant 0 : i32
    return %arg0, %arg1, %c0_i32, %c0_i32_0 : i32, i32, i32, i32
  }
}

</mosaic_0001>

<llo_original>
// kernel: _tv_loss_impl.1
$region0: #{_tv_loss_impl.1}
  #allocation0 [shape = 'u32[]', space=smem, size = 0x4, offset = 0x4, fixed_abs, tag = 'smem constant byte address 0x4 - core index']
  #allocation1 [shape = 'u32[144,128]{1,0:T(1,128)}', space=vmem, size = 0x12000, scoped, tag = 'internal scratch']
  #allocation2 [shape = 'f32[4,16]{1,0:T(4,128)}', space=vmem, size = 0x800, scoped, tag = 'scratch operand']
  #allocation3 [shape = 'f32[1,16]{1,0:T(1,128)}', space=vmem, size = 0x200, scoped, tag = 'scratch operand']
  #allocation4 [shape = 'f32[1,16]{1,0:T(1,128)}', space=vmem, size = 0x200, scoped, tag = 'scratch operand']
  %s0 = inlined_call_operand.hbm [shape: f32[2,4,16,16], index: 0, kind: input, shape index: {}]
  %s1 = inlined_call_operand.vmem [shape: f32[2,1,1,1], index: 1, kind: output, shape index: {0}]
  %s2 = inlined_call_operand.vmem [shape: f32[2,1,1,1], index: 2, kind: output, shape index: {1}]
  %3 = xla_tuple %s1, %s2
  %s4 = sld [smem:[#allocation0]]
  $region57: #{_tv_loss_impl.1} parent=0
    _
  %s6 = ssub.s32 1, %s4
  %s7 = scalar_select 0, %s6, %s4
  $region1: #{_tv_loss_impl.1} parent=0
    #allocation5 [shape = 'u8[65536]{0}', space=vmem, size = 0x10000, scoped, tag = 'input window, operand 0']
    #allocation6 [shape = 's32[2]{0}', space=sflag, size = 0x8, scoped, tag = 'scoped memory for _tv_loss_impl.1']
    %8 = vsyncpa [#allocation6], 0
    %s9 = scalar_lea.sflag [#allocation6], 1
    %10 = vsyncpa %s9, 0
    loop: start=0, step=1, limit=4
    $region2: #{_tv_loss_impl.1} parent=1 // loop_pre_header
      _
    $region3: #{_tv_loss_impl.1} parent=1 // loop_header
      %s12 = sphi 0, %s16
      %p13 = scmp.ge.s32.totalorder %s12, 4
      %s19 = sphi 0, %s38
      %s20 = sphi 0, %s34
      %s21 = sphi 0, %s30
      %s22 = sphi 0, %s19
      %s23 = sphi 0, %s20
      %s24 = sphi 0, %s21
      %s25 = sphi 0, %s22
      %s26 = sphi 0, %s23
      %s27 = sphi 0, %s24
      %s45 = sphi 0, %s47
      %s48 = sphi 0, %s45
      %s49 = sphi 0, %s48
      %s65 = sphi 0, %s49
      %s73 = sphi 0, %s75
      %s76 = sphi 0, %s73
      %s77 = sphi 0, %s76
      %s93 = sphi 0, %s77
      %s101 = sphi 0, %s103
      %s104 = sphi 0, %s101
      %s105 = sphi 0, %s104
      %s121 = sphi 0, %s105
    $region4: #{_tv_loss_impl.1} parent=1 // loop_header_branch
      %15 = sbr.rel (%p13) target = $region8
    $region5: #{_tv_loss_impl.1} parent=1 // loop_body
      %s17 = ssub.s32 %s12, 1
      %s18 = ssub.s32 %s12, 2
      %s28 = sadd.s32 1, %s21
      %p29 = scmp.ge.s32.totalorder %s28, 1
      %s30 = scalar_select %p29, 0, %s28
      %s31 = sadd.s32 1, %s20
      %s32 = scalar_select %p29, %s31, %s20
      %p33 = scmp.ge.s32.totalorder %s32, 1
      %s34 = scalar_select %p33, 0, %s32
      %s35 = sadd.s32 1, %s19
      %s36 = scalar_select %p33, %s35, %s19
      %p37 = scmp.ge.s32.totalorder %s36, 2
      %s38 = scalar_select %p37, 0, %s36
      %s39 = ssub.s32 %s19, %s38
      %s40 = ssub.s32 %s20, %s34
      %s41 = sor.u32 %s39, %s40
      %s42 = ssub.s32 %s21, %s30
      %s43 = sor.u32 %s41, %s42
      %p44 = scmp.eq.s32.totalorder %s43, 0
      %s46 = sadd.s32 %s45, 1
      %s47 = scalar_select %p44, %s45, %s46
      %p50 = pneg %p44
      %p51 = scmp.eq.s32.totalorder %s12, 1
      %p52 = por %p50, %p51
      %p53 = scmp.ne.s32.totalorder %s45, %s48
      %p54 = scmp.eq.s32.totalorder %s12, 0
      %p55 = por %p53, %p54
      %p56 = scmp.ne.s32.totalorder %s45, %s48
      %p57 = scmp.eq.s32.totalorder %s17, 1
      %p58 = por %p56, %p57
      %p59 = scmp.ne.s32.totalorder %s48, %s49
      %p60 = scmp.eq.s32.totalorder %s17, 0
      %p61 = por %p59, %p60
      %p62 = scmp.ne.s32.totalorder %s48, %s49
      %p63 = scmp.eq.s32.totalorder %s18, 1
      %p64 = por %p62, %p63
      %p66 = scmp.ne.s32.totalorder %s49, %s65
      %p67 = scmp.eq.s32.totalorder %s18, 0
      %p68 = por %p66, %p67
      %s69 = ssub.s32 %s19, %s38
      %s70 = ssub.s32 %s20, %s34
      %s71 = sor.u32 %s69, %s70
      %p72 = scmp.eq.s32.totalorder %s71, 0
      %s74 = sadd.s32 %s73, 1
      %s75 = scalar_select %p72, %s73, %s74
      %p78 = pneg %p72
      %p79 = scmp.eq.s32.totalorder %s12, 1
      %p80 = por %p78, %p79
      %p81 = scmp.ne.s32.totalorder %s73, %s76
      %p82 = scmp.eq.s32.totalorder %s12, 0
      %p83 = por %p81, %p82
      %p84 = scmp.ne.s32.totalorder %s73, %s76
      %p85 = scmp.eq.s32.totalorder %s17, 1
      %p86 = por %p84, %p85
      %p87 = scmp.ne.s32.totalorder %s76, %s77
      %p88 = scmp.eq.s32.totalorder %s17, 0
      %p89 = por %p87, %p88
      %p90 = scmp.ne.s32.totalorder %s76, %s77
      %p91 = scmp.eq.s32.totalorder %s18, 1
      %p92 = por %p90, %p91
      %p94 = scmp.ne.s32.totalorder %s77, %s93
      %p95 = scmp.eq.s32.totalorder %s18, 0
      %p96 = por %p94, %p95
      %s97 = ssub.s32 %s19, %s38
      %s98 = ssub.s32 %s20, %s34
      %s99 = sor.u32 %s97, %s98
      %p100 = scmp.eq.s32.totalorder %s99, 0
      %s102 = sadd.s32 %s101, 1
      %s103 = scalar_select %p100, %s101, %s102
      %p106 = pneg %p100
      %p107 = scmp.eq.s32.totalorder %s12, 1
      %p108 = por %p106, %p107
      %p109 = scmp.ne.s32.totalorder %s101, %s104
      %p110 = scmp.eq.s32.totalorder %s12, 0
      %p111 = por %p109, %p110
      %p112 = scmp.ne.s32.totalorder %s101, %s104
      %p113 = scmp.eq.s32.totalorder %s17, 1
      %p114 = por %p112, %p113
      %p115 = scmp.ne.s32.totalorder %s104, %s105
      %p116 = scmp.eq.s32.totalorder %s17, 0
      %p117 = por %p115, %p116
      %p118 = scmp.ne.s32.totalorder %s104, %s105
      %p119 = scmp.eq.s32.totalorder %s18, 1
      %p120 = por %p118, %p119
      %p122 = scmp.ne.s32.totalorder %s105, %s121
      %p123 = scmp.eq.s32.totalorder %s18, 0
      %p124 = por %p122, %p123
      %p125 = scmp.le.s32.totalorder 1, %s12
      %p126 = scmp.lt.s32.totalorder %s12, 3
      %p127 = pnand %p125, %p126
      %p128 = pneg %p127
      // Predicated region
      $region9: #{_tv_loss_impl.1} parent=5 // pred_check
        _
      $region10: #{_tv_loss_impl.1} parent=5 // pred_check_branch
        %130 = sbr.rel (%p127) target = $region12
      $region11: #{_tv_loss_impl.1} parent=5 // pred_region
        %s131 = ssub.s32 %s12, 1
      $region12: #{_tv_loss_impl.1} parent=5 // pred_fallthru
        _
      %p132 = scmp.lt.s32.totalorder %s12, 2
      // Predicated region
      $region13: #{_tv_loss_impl.1} parent=5 // pred_check
        %p133 = pneg %p132
      $region14: #{_tv_loss_impl.1} parent=5 // pred_check_branch
        %135 = sbr.rel (%p133) target = $region16
      $region15: #{_tv_loss_impl.1} parent=5 // pred_region
        // Predicated region
        $region17: #{_tv_loss_impl.1} parent=15 // pred_check
          %p136 = pneg %p55
        $region18: #{_tv_loss_impl.1} parent=15 // pred_check_branch
          %138 = sbr.rel (%p136) target = $region20
        $region19: #{_tv_loss_impl.1} parent=15 // pred_region
          %s139 = sand.u32 %s45, 1
          %s140 = scalar_lea.sflag [#allocation6], %s139
          %s141 = sand.u32 %s45, 1
          %s142 = smul.addr %s141, 64
          %s143 = scalar_lea.vmem [#allocation5], %s142
          %s144 = smul.u32 4, %s20
          %s145 = smul.u32 2, %s21
          %s147 = ssub.s32 1024, 1024
          %148 = vsyncadd %s140, %s147
          %s149 = smul.addr %s144, 2
          %s150 = sadd.s32 %s145, %s149
          %s151 = smul.addr %s19, 8
          %s152 = sadd.s32 %s150, %s151
          %s153 = smul.addr %s152, 128
          %s154 = scalar_lea.hbm %s0, %s153
          %s155 = sshll.u32 %s143, 4
          %s156 = int_to_ptr.vmem [resolvable:$true] %s155
          %161 = dma.hbm_to_vmem [thread:$0]  %s154, 1024, %s156, %s140, 128, 128, 8
        $region20: #{_tv_loss_impl.1} parent=15 // pred_fallthru
          _
      $region16: #{_tv_loss_impl.1} parent=5 // pred_fallthru
        _
      %p162 = scmp.le.s32.totalorder 1, %s12
      %p163 = scmp.lt.s32.totalorder %s12, 3
      %p164 = pnand %p162, %p163
      %p165 = pneg %p164
      // Predicated region
      $region21: #{_tv_loss_impl.1} parent=5 // pred_check
        _
      $region22: #{_tv_loss_impl.1} parent=5 // pred_check_branch
        %167 = sbr.rel (%p164) target = $region24
      $region23: #{_tv_loss_impl.1} parent=5 // pred_region
        %s168 = ssub.s32 %s12, 1
        %s169 = sand.u32 %s48, 1
        %s170 = scalar_lea.sflag [#allocation6], %s169
        %s171 = sand.u32 %s48, 1
        %s172 = smul.addr %s171, 64
        %s173 = scalar_lea.vmem [#allocation5], %s172
        // Predicated region
        $region25: #{_tv_loss_impl.1} parent=23 // pred_check
          %p174 = pneg %p61
        $region26: #{_tv_loss_impl.1} parent=23 // pred_check_branch
          %176 = sbr.rel (%p174) target = $region28
        $region27: #{_tv_loss_impl.1} parent=23 // pred_region
          %177 = dma.done %s170, 1024
        $region28: #{_tv_loss_impl.1} parent=23 // pred_fallthru
          _
        %s178 = sand.u32 %s48, 1
        %s179 = scalar_lea.sflag [#allocation6], %s178
        %s180 = sand.u32 %s48, 1
        %s181 = smul.addr %s180, 64
        %s182 = scalar_lea.vmem [#allocation5], %s181
        %p183 = pneg %p61
        %p184 = pneg %p58
        %p185 = pneg %p89
        %p186 = pneg %p86
        %p187 = scmp.lt.s32.totalorder %s22, 1
        %s188 = scalar_select %p187, %s22, 1
        %p189 = scmp.lt.s32.totalorder %s23, 0
        %s190 = scalar_select %p189, %s23, 0
        %s191 = sadd.s32 %s190, %s188
        %s192 = scalar_lea.vmem %s1, %s191
        %p193 = pneg %p117
        %p194 = pneg %p114
        %p195 = scmp.lt.s32.totalorder %s22, 1
        %s196 = scalar_select %p195, %s22, 1
        %p197 = scmp.lt.s32.totalorder %s23, 0
        %s198 = scalar_select %p197, %s23, 0
        %s199 = sadd.s32 %s198, %s196
        %s200 = scalar_lea.vmem %s2, %s199
        %s201 = smul.u32 4, %s23
        %s202 = smul.u32 2, %s24
        %p203 = scmp.lt.s32.totalorder %s22, 1
        %s204 = scalar_select %p203, %s22, 1
        %p205 = scmp.lt.s32.totalorder %s23, 0
        %s206 = scalar_select %p205, %s23, 0
        %s207 = sadd.s32 %s206, %s204
        %s208 = scalar_lea.vmem %s1, %s207
        %p209 = scmp.lt.s32.totalorder %s22, 1
        %s210 = scalar_select %p209, %s22, 1
        %p211 = scmp.lt.s32.totalorder %s23, 0
        %s212 = scalar_select %p211, %s23, 0
        %s213 = sadd.s32 %s212, %s210
        %s214 = scalar_lea.vmem %s2, %s213
        %p215 = scmp.eq.s32.totalorder %s24, 0
        // Predicated region
        $region29: #{_tv_loss_impl.1} parent=23 // pred_check
          %p216 = pneg %p215
        $region30: #{_tv_loss_impl.1} parent=23 // pred_check_branch
          %218 = sbr.rel (%p216) target = $region32
        $region31: #{_tv_loss_impl.1} parent=23 // pred_region
          %vm219 = vcmask 122880
          %220 = vst.msk [vmem:[#allocation3] sm:$0x1] %vm219, 0.0
          %221 = vst.msk [vmem:[#allocation4] sm:$0x1] %vm219, 0.0
        $region32: #{_tv_loss_impl.1} parent=23 // pred_fallthru
          _
        %v222 = vld [vmem:[%s173] sm:$0xff]
        %v223 = vld [vmem:[%s173 + $0x8] sm:$0xff]
        %v224 = vld [vmem:[%s173 + $0x10] sm:$0xff]
        %v225 = vld [vmem:[%s173 + $0x18] sm:$0xff]
        %v226 = vld [vmem:[%s173 + $0x20] sm:$0xff]
        %v227 = vld [vmem:[%s173 + $0x28] sm:$0xff]
        %v228 = vld [vmem:[%s173 + $0x30] sm:$0xff]
        %v229 = vld [vmem:[%s173 + $0x38] sm:$0xff]
        %238 = vrot.lane.b32.xlu0 %v222, 1
        %v239 = vpop.permute.xlu0 %238
        %240 = vrot.lane.b32.xlu0 %v223, 1
        %v241 = vpop.permute.xlu0 %240
        %242 = vrot.lane.b32.xlu0 %v224, 1
        %v243 = vpop.permute.xlu0 %242
        %244 = vrot.lane.b32.xlu0 %v225, 1
        %v245 = vpop.permute.xlu0 %244
        %246 = vrot.lane.b32.xlu0 %v226, 1
        %v247 = vpop.permute.xlu0 %246
        %248 = vrot.lane.b32.xlu0 %v227, 1
        %v249 = vpop.permute.xlu0 %248
        %250 = vrot.lane.b32.xlu0 %v228, 1
        %v251 = vpop.permute.xlu0 %250
        %252 = vrot.lane.b32.xlu0 %v229, 1
        %v253 = vpop.permute.xlu0 %252
        %v262 = vsub.f32 %v222, %v239
        %v263 = vsub.f32 %v223, %v241
        %v264 = vsub.f32 %v224, %v243
        %v265 = vsub.f32 %v225, %v245
        %v266 = vsub.f32 %v226, %v247
        %v267 = vsub.f32 %v227, %v249
        %v268 = vsub.f32 %v228, %v251
        %v269 = vsub.f32 %v229, %v253
        %v270 = vld [vmem:[#allocation4] sm:$0x1]
        %v271 = vmul.f32 %v262, %v262
        %v272 = vmul.f32 %v263, %v263
        %v273 = vmul.f32 %v264, %v264
        %v274 = vmul.f32 %v265, %v265
        %v275 = vmul.f32 %v266, %v266
        %v276 = vmul.f32 %v267, %v267
        %v277 = vmul.f32 %v268, %v268
        %v278 = vmul.f32 %v269, %v269
        %vm279 = vcmask 130056
        %v280 = vsel %vm279, %v271, 0.0
        %v281 = vsel %vm279, %v272, 0.0
        %v282 = vadd.f32 %v280, %v281
        %v283 = vsel %vm279, %v273, 0.0
        %v284 = vadd.f32 %v282, %v283
        %v285 = vsel %vm279, %v274, 0.0
        %v286 = vadd.f32 %v284, %v285
        %v287 = vsel %vm279, %v275, 0.0
        %v288 = vadd.f32 %v286, %v287
        %v289 = vsel %vm279, %v276, 0.0
        %v290 = vadd.f32 %v288, %v289
        %v291 = vsel %vm279, %v277, 0.0
        %v292 = vadd.f32 %v290, %v291
        %v293 = vsel %vm279, %v278, 0.0
        %v294 = vadd.f32 %v292, %v293
        %v295 = vrot.slane %v294, 4
        %v296 = vadd.f32 %v294, %v295
        %v297 = vrot.slane %v296, 2
        %v298 = vadd.f32 %v296, %v297
        %v299 = vrot.slane %v298, 1
        %v300 = vadd.f32 %v298, %v299
        %v303 = vunpack.c.l.s4 1966171168
        %v304 = vunpack.c.0.s8 %v303
        %v305 = vlaneseq
        %v306 = vshrl.u32 %v305, 7
        %v307 = vsub.s32 %v304, %v306
        %v308 = vrot.slane %v300, %v307
        %v310 = vunpack.c.l.s4 1966171168
        %v311 = vunpack.c.0.s8 %v310
        %v312 = vlaneseq
        %v313 = vshrl.u32 %v312, 7
        %v314 = vsub.s32 %v311, %v313
        %v315 = vrot.slane %v308, %v314
        %316 = vrot.lane.b32.xlu0 %v315, 127
        %v317 = vpop.permute.xlu0 %316
        %v319 = vadd.f32 %v270, %v317
        %vm320 = vcmask 114688
        %321 = vst.msk [vmem:[#allocation4] sm:$0x1] %vm320, %v319
        %vm322 = vcmask 1040384
        %v323 = vrot.slane %v222, 7
        %v324 = vrot.slane %v223, 7
        %v325 = vsel %vm322, %v323, %v324
        %v326 = vrot.slane %v224, 7
        %v327 = vsel %vm322, %v324, %v326
        %v328 = vrot.slane %v225, 7
        %v329 = vsel %vm322, %v326, %v328
        %v330 = vrot.slane %v226, 7
        %v331 = vsel %vm322, %v328, %v330
        %v332 = vrot.slane %v227, 7
        %v333 = vsel %vm322, %v330, %v332
        %v334 = vrot.slane %v228, 7
        %v335 = vsel %vm322, %v332, %v334
        %v336 = vrot.slane %v229, 7
        %v337 = vsel %vm322, %v334, %v336
        %v346 = vsub.f32 %v222, %v323
        %v347 = vsub.f32 %v223, %v325
        %v348 = vsub.f32 %v224, %v327
        %v349 = vsub.f32 %v225, %v329
        %v350 = vsub.f32 %v226, %v331
        %v351 = vsub.f32 %v227, %v333
        %v352 = vsub.f32 %v228, %v335
        %v353 = vsub.f32 %v229, %v337
        %v354 = vlaneseq
        %v355 = vshrl.u32 %v354, 7
        %v356 = vadd.s32 %v355, 8
        %v357 = vadd.s32 %v355, 16
        %v358 = vadd.s32 %v355, 24
        %v359 = vadd.s32 %v355, 32
        %v360 = vadd.s32 %v355, 40
        %v361 = vadd.s32 %v355, 48
        %v362 = vadd.s32 %v355, 56
        %vm363 = vcmp.lt.s32.totalorder %v355, 0
        %v364 = vsub.s32 0, %v355
        %v365 = vsel %vm363, %v364, %v355
        %v366 = vshrl.u32 %v365, 4
        %v367 = vand.u32 %v365, 15
        %v368 = vsub.s32 0, %v367
        %v369 = vsel %vm363, %v368, %v367
        %vm370 = vcmp.lt.s32.totalorder %v356, 0
        %v371 = vsub.s32 0, %v356
        %v372 = vsel %vm370, %v371, %v356
        %v373 = vshrl.u32 %v372, 4
        %v374 = vand.u32 %v372, 15
        %v375 = vsub.s32 0, %v374
        %v376 = vsel %vm370, %v375, %v374
        %vm377 = vcmp.lt.s32.totalorder %v357, 0
        %v378 = vsub.s32 0, %v357
        %v379 = vsel %vm377, %v378, %v357
        %v380 = vshrl.u32 %v379, 4
        %v381 = vand.u32 %v379, 15
        %v382 = vsub.s32 0, %v381
        %v383 = vsel %vm377, %v382, %v381
        %vm384 = vcmp.lt.s32.totalorder %v358, 0
        %v385 = vsub.s32 0, %v358
        %v386 = vsel %vm384, %v385, %v358
        %v387 = vshrl.u32 %v386, 4
        %v388 = vand.u32 %v386, 15
        %v389 = vsub.s32 0, %v388
        %v390 = vsel %vm384, %v389, %v388
        %vm391 = vcmp.lt.s32.totalorder %v359, 0
        %v392 = vsub.s32 0, %v359
        %v393 = vsel %vm391, %v392, %v359
        %v394 = vshrl.u32 %v393, 4
        %v395 = vand.u32 %v393, 15
        %v396 = vsub.s32 0, %v395
        %v397 = vsel %vm391, %v396, %v395
        %vm398 = vcmp.lt.s32.totalorder %v360, 0
        %v399 = vsub.s32 0, %v360
        %v400 = vsel %vm398, %v399, %v360
        %v401 = vshrl.u32 %v400, 4
        %v402 = vand.u32 %v400, 15
        %v403 = vsub.s32 0, %v402
        %v404 = vsel %vm398, %v403, %v402
        %vm405 = vcmp.lt.s32.totalorder %v361, 0
        %v406 = vsub.s32 0, %v361
        %v407 = vsel %vm405, %v406, %v361
        %v408 = vshrl.u32 %v407, 4
        %v409 = vand.u32 %v407, 15
        %v410 = vsub.s32 0, %v409
        %v411 = vsel %vm405, %v410, %v409
        %vm412 = vcmp.lt.s32.totalorder %v362, 0
        %v413 = vsub.s32 0, %v362
        %v414 = vsel %vm412, %v413, %v362
        %v415 = vshrl.u32 %v414, 4
        %v416 = vand.u32 %v414, 15
        %v417 = vsub.s32 0, %v416
        %v418 = vsel %vm412, %v417, %v416
        %vm419 = vcmp.ne.s32.totalorder %v369, 0
        %vm420 = vcmp.ne.s32.totalorder %v376, 0
        %vm421 = vcmp.ne.s32.totalorder %v383, 0
        %vm422 = vcmp.ne.s32.totalorder %v390, 0
        %vm423 = vcmp.ne.s32.totalorder %v397, 0
        %vm424 = vcmp.ne.s32.totalorder %v404, 0
        %vm425 = vcmp.ne.s32.totalorder %v411, 0
        %vm426 = vcmp.ne.s32.totalorder %v418, 0
        %vm427 = vcmp.lt.s32.totalorder %v369, 0
        %vm428 = vcmp.lt.s32.totalorder %v376, 0
        %vm429 = vcmp.lt.s32.totalorder %v383, 0
        %vm430 = vcmp.lt.s32.totalorder %v390, 0
        %vm431 = vcmp.lt.s32.totalorder %v397, 0
        %vm432 = vcmp.lt.s32.totalorder %v404, 0
        %vm433 = vcmp.lt.s32.totalorder %v411, 0
        %vm434 = vcmp.lt.s32.totalorder %v418, 0
        %vm435 = vmand %vm427, %vm419
        %vm436 = vmand %vm428, %vm420
        %vm437 = vmand %vm429, %vm421
        %vm438 = vmand %vm430, %vm422
        %vm439 = vmand %vm431, %vm423
        %vm440 = vmand %vm432, %vm424
        %vm441 = vmand %vm433, %vm425
        %vm442 = vmand %vm434, %vm426
        %v443 = vadd.s32 %v369, 16
        %v444 = vadd.s32 %v376, 16
        %v445 = vadd.s32 %v383, 16
        %v446 = vadd.s32 %v390, 16
        %v447 = vadd.s32 %v397, 16
        %v448 = vadd.s32 %v404, 16
        %v449 = vadd.s32 %v411, 16
        %v450 = vadd.s32 %v418, 16
        %v451 = vsel %vm435, %v443, %v369
        %v452 = vsel %vm436, %v444, %v376
        %v453 = vsel %vm437, %v445, %v383
        %v454 = vsel %vm438, %v446, %v390
        %v455 = vsel %vm439, %v447, %v397
        %v456 = vsel %vm440, %v448, %v404
        %v457 = vsel %vm441, %v449, %v411
        %v458 = vsel %vm442, %v450, %v418
        %vm459 = vcmp.ne.s32.totalorder %v451, 15
        %vm460 = vcmp.ne.s32.totalorder %v452, 15
        %vm461 = vcmp.ne.s32.totalorder %v453, 15
        %vm462 = vcmp.ne.s32.totalorder %v454, 15
        %vm463 = vcmp.ne.s32.totalorder %v455, 15
        %vm464 = vcmp.ne.s32.totalorder %v456, 15
        %vm465 = vcmp.ne.s32.totalorder %v457, 15
        %vm466 = vcmp.ne.s32.totalorder %v458, 15
        %vm475 = vcmask 1046528
        %v476 = vrot.slane %v346, 1
        %v477 = vrot.slane %v347, 1
        %v478 = vsel %vm475, %v476, %v477
        %v479 = vrot.slane %v348, 1
        %v480 = vsel %vm475, %v477, %v479
        %v481 = vrot.slane %v349, 1
        %v482 = vsel %vm475, %v479, %v481
        %v483 = vrot.slane %v350, 1
        %v484 = vsel %vm475, %v481, %v483
        %v485 = vrot.slane %v351, 1
        %v486 = vsel %vm475, %v483, %v485
        %v487 = vrot.slane %v352, 1
        %v488 = vsel %vm475, %v485, %v487
        %v489 = vrot.slane %v353, 1
        %v490 = vsel %vm475, %v487, %v489
        %v499 = vsel %vm459, %v478, 0.0
        %v500 = vsel %vm460, %v480, 0.0
        %v501 = vsel %vm461, %v482, 0.0
        %v502 = vsel %vm462, %v484, 0.0
        %v503 = vsel %vm463, %v486, 0.0
        %v504 = vsel %vm464, %v488, 0.0
        %v505 = vsel %vm465, %v490, 0.0
        %v506 = vsel %vm466, %v489, 0.0
        %v507 = vld [vmem:[#allocation3] sm:$0x1]
        %v508 = vmul.f32 %v499, %v499
        %v509 = vmul.f32 %v500, %v500
        %v510 = vmul.f32 %v501, %v501
        %v511 = vmul.f32 %v502, %v502
        %v512 = vmul.f32 %v503, %v503
        %v513 = vmul.f32 %v504, %v504
        %v514 = vmul.f32 %v505, %v505
        %v515 = vmul.f32 %v506, %v506
        %vm516 = vcmask 130048
        %v517 = vsel %vm516, %v508, 0.0
        %v518 = vsel %vm516, %v509, 0.0
        %v519 = vadd.f32 %v517, %v518
        %v520 = vsel %vm516, %v510, 0.0
        %v521 = vadd.f32 %v519, %v520
        %v522 = vsel %vm516, %v511, 0.0
        %v523 = vadd.f32 %v521, %v522
        %v524 = vsel %vm516, %v512, 0.0
        %v525 = vadd.f32 %v523, %v524
        %v526 = vsel %vm516, %v513, 0.0
        %v527 = vadd.f32 %v525, %v526
        %v528 = vsel %vm516, %v514, 0.0
        %v529 = vadd.f32 %v527, %v528
        %vm530 = vcmask 129024
        %v531 = vsel %vm530, %v515, 0.0
        %v532 = vadd.f32 %v529, %v531
        %v533 = vrot.slane %v532, 4
        %v534 = vadd.f32 %v532, %v533
        %v535 = vrot.slane %v534, 2
        %v536 = vadd.f32 %v534, %v535
        %v537 = vrot.slane %v536, 1
        %v538 = vadd.f32 %v536, %v537
        %v539 = vadd.f32 %v507, %v538
        %vm540 = vcmask 122880
        %541 = vst.msk [vmem:[#allocation3] sm:$0x1] %vm540, %v539
        // Predicated region
        $region33: #{_tv_loss_impl.1} parent=23 // pred_check
          %p542 = pneg %p215
        $region34: #{_tv_loss_impl.1} parent=23 // pred_check_branch
          %544 = sbr.rel (%p542) target = $region36
        $region35: #{_tv_loss_impl.1} parent=23 // pred_region
          %v545 = vld [vmem:[#allocation3] sm:$0x1]
          %v546 = vsel %vm540, %v545, 0.0
          %547 = vadd.xlane.f32.xlu0 %v546
          %v548 = vpop.xlane.xlu0 %547
          %v549 = vrot.slane %v548, 4
          %v550 = vadd.f32 %v548, %v549
          %v551 = vrot.slane %v550, 2
          %v552 = vadd.f32 %v550, %v551
          %v553 = vrot.slane %v552, 1
          %v554 = vadd.f32 %v552, %v553
          %s555 = vtos %v554
          %v556 = vstv %s555
          %vm557 = vcmask 0
          %558 = vst.msk [vmem:[%s208] sm:$0x1] %vm557, %v556
          %v559 = vld [vmem:[#allocation4] sm:$0x1]
          %v560 = vsel %vm540, %v559, 0.0
          %561 = vadd.xlane.f32.xlu0 %v560
          %v562 = vpop.xlane.xlu0 %561
          %v563 = vrot.slane %v562, 4
          %v564 = vadd.f32 %v562, %v563
          %v565 = vrot.slane %v564, 2
          %v566 = vadd.f32 %v564, %v565
          %v567 = vrot.slane %v566, 1
          %v568 = vadd.f32 %v566, %v567
          %s569 = vtos %v568
          %v570 = vstv %s569
          %571 = vst.msk [vmem:[%s214] sm:$0x1] %vm557, %v570
        $region36: #{_tv_loss_impl.1} parent=23 // pred_fallthru
          _
        %p572 = scmp.lt.s32.totalorder %s22, 1
        %s573 = scalar_select %p572, %s22, 1
        %p574 = scmp.lt.s32.totalorder %s23, 0
        %s575 = scalar_select %p574, %s23, 0
        %s576 = sadd.s32 %s575, %s573
        %s577 = scalar_lea.vmem %s1, %s576
        %p578 = scmp.lt.s32.totalorder %s22, 1
        %s579 = scalar_select %p578, %s22, 1
        %p580 = scmp.lt.s32.totalorder %s23, 0
        %s581 = scalar_select %p580, %s23, 0
        %s582 = sadd.s32 %s581, %s579
        %s583 = scalar_lea.vmem %s2, %s582
        // Predicated region
        $region37: #{_tv_loss_impl.1} parent=23 // pred_check
          %p584 = pneg %p86
        $region38: #{_tv_loss_impl.1} parent=23 // pred_check_branch
          %586 = sbr.rel (%p584) target = $region40
        $region39: #{_tv_loss_impl.1} parent=23 // pred_region
          _
        $region40: #{_tv_loss_impl.1} parent=23 // pred_fallthru
          _
        // Predicated region
        $region41: #{_tv_loss_impl.1} parent=23 // pred_check
          %p587 = pneg %p114
        $region42: #{_tv_loss_impl.1} parent=23 // pred_check_branch
          %589 = sbr.rel (%p587) target = $region44
        $region43: #{_tv_loss_impl.1} parent=23 // pred_region
          _
        $region44: #{_tv_loss_impl.1} parent=23 // pred_fallthru
          _
      $region24: #{_tv_loss_impl.1} parent=5 // pred_fallthru
        _
      %p590 = scmp.le.s32.totalorder 2, %s12
      // Predicated region
      $region45: #{_tv_loss_impl.1} parent=5 // pred_check
        %p591 = pneg %p590
      $region46: #{_tv_loss_impl.1} parent=5 // pred_check_branch
        %593 = sbr.rel (%p591) target = $region48
      $region47: #{_tv_loss_impl.1} parent=5 // pred_region
        %s594 = ssub.s32 %s12, 2
        // Predicated region
        $region49: #{_tv_loss_impl.1} parent=47 // pred_check
          %p595 = pneg %p92
        $region50: #{_tv_loss_impl.1} parent=47 // pred_check_branch
          %597 = sbr.rel (%p595) target = $region52
        $region51: #{_tv_loss_impl.1} parent=47 // pred_region
          %p598 = scmp.lt.s32.totalorder %s25, 1
          %s599 = scalar_select %p598, %s25, 1
          %p600 = scmp.lt.s32.totalorder %s26, 0
          %s601 = scalar_select %p600, %s26, 0
          %s602 = sadd.s32 %s601, %s599
          %s603 = scalar_lea.vmem %s1, %s602
        $region52: #{_tv_loss_impl.1} parent=47 // pred_fallthru
          _
        // Predicated region
        $region53: #{_tv_loss_impl.1} parent=47 // pred_check
          %p604 = pneg %p120
        $region54: #{_tv_loss_impl.1} parent=47 // pred_check_branch
          %606 = sbr.rel (%p604) target = $region56
        $region55: #{_tv_loss_impl.1} parent=47 // pred_region
          %p607 = scmp.lt.s32.totalorder %s25, 1
          %s608 = scalar_select %p607, %s25, 1
          %p609 = scmp.lt.s32.totalorder %s26, 0
          %s610 = scalar_select %p609, %s26, 0
          %s611 = sadd.s32 %s610, %s608
          %s612 = scalar_lea.vmem %s2, %s611
        $region56: #{_tv_loss_impl.1} parent=47 // pred_fallthru
          _
      $region48: #{_tv_loss_impl.1} parent=5 // pred_fallthru
        _
    $region6: #{_tv_loss_impl.1} parent=1 // loop_footer
      %s16 = sadd.s32 1, %s12
    $region7: #{_tv_loss_impl.1} parent=1 // loop_footer_branch
      %11 = sbr.rel target = $region3
    $region8: #{_tv_loss_impl.1} parent=1 // loop_exit
      _
    %613 = vsyncpa [#allocation6], 1
    %s614 = scalar_lea.sflag [#allocation6], 1
    %615 = vsyncpa %s614, 1

</llo_original>
